<compile_context>
chip_gen: v7x
topology: tpu7x:2x2x1
jax: 0.10.0
libtpu: 0.0.40
codegen_flags: <defaults>
</compile_context>

<pallas_src>
import functools
import math

import jax
import jax.numpy as jnp
from jax.experimental import pallas as pl
from jax.experimental.pallas import tpu as pltpu


# ---------------------------------------------------------------------------
# pe buffer construction (glue, not hot path) + cache so the dtype cast /
# reshape is NOT redone (an extra HBM read+write of pe) on every forward.
# ---------------------------------------------------------------------------
def _build_pe(n_rows: int, d_model: int) -> jnp.ndarray:
    """First n_rows rows of the PyTorch __init__ pe buffer (fp32)."""
    position = jnp.arange(n_rows, dtype=jnp.float32)[:, None]
    div_term = jnp.exp(
        jnp.arange(0, d_model, 2, dtype=jnp.float32) * -(math.log(10000.0) / d_model)
    )
    pe = jnp.zeros((n_rows, d_model), dtype=jnp.float32)
    pe = pe.at[:, 0::2].set(jnp.sin(position * div_term))
    pe = pe.at[:, 1::2].set(jnp.cos(position * div_term))
    return pe


_PE_CACHE: dict = {}


def _pe_block(S: int, D: int, dtype, fold: int, max_len: int) -> jnp.ndarray:
    """Cached pe in the activation dtype, reshaped to (fold, S*D // fold)."""
    if S > max_len:
        raise ValueError(f"sequence length {S} exceeds max_len {max_len}")
    key = (S, D, jnp.dtype(dtype).name, fold)
    blk = _PE_CACHE.get(key)
    if blk is None:
        pe = _build_pe(S, D)  # identical to pe_buffer[:S] of a max_len build
        blk = pe.astype(dtype).reshape(fold, (S * D) // fold)
        blk = jax.block_until_ready(blk)
        _PE_CACHE[key] = blk
    return blk


# ---------------------------------------------------------------------------
# kernel
# ---------------------------------------------------------------------------
def _pe_add_kernel(x_ref, pe_ref, o_ref, *, rep: int):
    # x_ref/o_ref: (tb, tc);  pe_ref: (fold, tc)
    pe = pe_ref[...]
    if rep == 1:
        o_ref[...] = x_ref[...] + pe          # broadcasts over rows when fold==1
    else:
        f = pe.shape[0]                        # == 8 -> slices stay sublane-aligned
        for r in range(rep):                   # static unroll, no big pe temp
            sl = pl.ds(r * f, f)
            o_ref[sl, :] = x_ref[sl, :] + pe


# ---------------------------------------------------------------------------
# tiling helpers
# ---------------------------------------------------------------------------
def _rdown(v: int, m: int) -> int:
    return (v // m) * m


def _pad8(v: int) -> int:
    return ((v + 7) // 8) * 8


def _fold_factor(B: int, N: int) -> int:
    # Small-batch rows (< 8) waste sublane padding in VMEM (blocks pad to 8
    # rows). Fold 8 virtual rows out of the column axis when it divides
    # cleanly so every sublane carries data and pe fills exactly 8 rows.
    if B < 8 and N % (128 * 8) == 0:
        return 8
    return 1


def _budgets():
    """Per-generation (x-tile byte target, VMEM buffer budget, scoped-VMEM cap)."""
    kind = ""
    try:
        kind = jax.devices()[0].device_kind.lower()
    except Exception:
        pass
    if "v7" in kind:
        # ~3.2 TB/s per-TC HBM -> bigger tiles so ~0.35us/step overhead stays <5%;
        # only 64 MiB physical VMEM -> cap the scoped limit at 48 MiB.
        return 6 << 20, 28 << 20, 48 << 20
    if "v6" in kind:
        return 4 << 20, 24 << 20, 64 << 20
    # v5e / v5p / v4 / unknown: 2 MiB tiles already amortize step overhead at
    # <=1 TB/s HBM; default scoped VMEM is small, so stay modest.
    return 2 << 20, 12 << 20, 32 << 20


def _pick_tiles(rows, cols, pe_rows, itemsize, tile_bytes, vmem_buf_bytes):
    # rows (sublane) tile: full dim for small row counts, else 256 (multiple of
    # 8; edge blocks may be partial -- Pallas pads them).
    tb = rows if rows <= 256 else 256
    # cols (lane) tile
    if cols <= 128:
        tc = cols                              # block == full dim is always legal
    else:
        # (a) amortize per-step overhead: ~tile_bytes of x data moved per step
        t_a = max(128, tile_bytes // max(1, tb * itemsize))
        # (b) fit double-buffered x-in, x-out and pe blocks in the VMEM budget
        #     (second-to-minor dims pad to 8 sublanes in VMEM)
        per_col = 2 * itemsize * (2 * _pad8(tb) + _pad8(pe_rows))
        t_b = max(128, vmem_buf_bytes // per_col)
        tc = min(_rdown(t_a, 128), _rdown(t_b, 128), _rdown(cols, 128))
        # (c) keep >=4 column blocks when the row axis has a single block, so
        #     both TensorCores get work and the DMA pipeline has steps to overlap
        if pl.cdiv(rows, tb) < 2:
            cap = _rdown(cols // 4, 128)
            if cap >= 128:
                tc = min(tc, cap)
        tc = max(tc, 128)
    return tb, tc


# ---------------------------------------------------------------------------
# forward
# ---------------------------------------------------------------------------
def positional_encoding_forward(
    x: jnp.ndarray,
    *,
    dropout_p: float = 0.0,          # unused: eval-mode dropout is identity
    max_len: int = 5000,
    use_pallas: bool | None = None,
) -> jnp.ndarray:
    """x: (B, S, D). Returns eval-mode dropout(x + pe[:S]) == x + pe[:S]."""
    B, S, D = x.shape
    N = S * D
    itemsize = jnp.dtype(x.dtype).itemsize

    if use_pallas is None:
        # Below a few MiB the fixed pallas_call launch + per-step grid overhead
        # loses to XLA's fused elementwise add.
        use_pallas = B * N * itemsize >= (4 << 20)

    if not use_pallas:
        pe = _pe_block(S, D, x.dtype, 1, max_len).reshape(1, S, D)
        return x + pe

    fold = _fold_factor(B, N)
    rows, cols = B * fold, N // fold
    pe2 = _pe_block(S, D, x.dtype, fold, max_len)   # (fold, cols), cached in x.dtype
    x2 = x.reshape(rows, cols)                      # contiguous row-major view

    tile_bytes, vmem_buf, vmem_cap = _budgets()
    tb, tc = _pick_tiles(rows, cols, fold, itemsize, tile_bytes, vmem_buf)
    rep = 1 if fold == 1 else tb // fold
    grid = (pl.cdiv(rows, tb), pl.cdiv(cols, tc))

    # Explicit scoped-VMEM limit sized from the actual double-buffered need
    # (sublane padding included) + headroom, clamped to the per-gen safe cap.
    need = 2 * itemsize * tc * (2 * _pad8(tb) + _pad8(fold))
    vmem_limit = int(min(vmem_cap, max(need + (12 << 20), 24 << 20)))

    out2 = pl.pallas_call(
        functools.partial(_pe_add_kernel, rep=rep),
        out_shape=jax.ShapeDtypeStruct((rows, cols), x.dtype),
        grid_spec=pltpu.PrefetchScalarGridSpec(
            num_scalar_prefetch=0,
            grid=grid,
            in_specs=[
                pl.BlockSpec((tb, tc), lambda i, j: (i, j)),     # x tile
                pl.BlockSpec((fold, tc), lambda i, j: (0, j)),   # pe row block
            ],
            out_specs=pl.BlockSpec((tb, tc), lambda i, j: (i, j)),
        ),
        compiler_params=pltpu.CompilerParams(
            dimension_semantics=("parallel", "parallel"),
            vmem_limit_bytes=vmem_limit,
        ),
    )(x2, pe2)

    return out2.reshape(B, S, D)


# ---------------------------------------------------------------------------
# self-test
# ---------------------------------------------------------------------------
if __name__ == "__main__":
    MAX_LEN = 5000
    DROPOUT_P = 0.1  # identity in eval mode

    key = jax.random.PRNGKey(0)
    k1, k2, k3 = jax.random.split(key, 3)

    # 1) canonical small shape (batch=2, seq=8, d_model=32), fp32, forced Pallas
    B, S, D = 2, 8, 32
    x = jax.random.normal(k1, (B, S, D), dtype=jnp.float32)
    y = jax.block_until_ready(
        positional_encoding_forward(x, dropout_p=DROPOUT_P, max_len=MAX_LEN,
                                    use_pallas=True))
    y_ref = x + _build_pe(S, D)[None]
    assert jnp.allclose(y, y_ref, atol=1e-6), "fp32 mismatch vs reference"

    # 2) non-divisible shape -> exercises partial (padded) edge column blocks
    B, S, D = 3, 33, 40
    x = jax.random.normal(k2, (B, S, D), dtype=jnp.float32)
    y = jax.block_until_ready(positional_encoding_forward(x, use_pallas=True))
    y_ref = x + _build_pe(S, D)[None]
    assert jnp.allclose(y, y_ref, atol=1e-6), "partial-block mismatch vs reference"

    # 3) bf16 with S*D % 1024 == 0 -> exercises the small-batch sublane-fold path
    B, S, D = 2, 16, 64
    x = jax.random.normal(k3, (B, S, D), dtype=jnp.bfloat16)
    y = jax.block_until_ready(positional_encoding_forward(x, use_pallas=True))
    y_ref = x + _build_pe(S, D)[None].astype(jnp.bfloat16)
    assert jnp.allclose(y.astype(jnp.float32), y_ref.astype(jnp.float32),
                        atol=1e-2), "bf16/fold mismatch vs reference"

    print("KERNEL_OK")
</pallas_src>

<mosaic_0001>
module attributes {stable_mosaic.version = 11 : i64} {
  func.func @_pe_add_kernel(%arg0: i32, %arg1: i32, %arg2: memref<2x256xf32, #tpu.memory_space<vmem>>, %arg3: memref<1x256xf32, #tpu.memory_space<vmem>>, %arg4: memref<2x256xf32, #tpu.memory_space<vmem>>) attributes {dimension_semantics = [#tpu.dimension_semantics<parallel>, #tpu.dimension_semantics<parallel>], iteration_bounds = array<i64: 1, 1>, scalar_prefetch = 0 : i64, scratch_operands = 0 : i64, tpu.core_type = #tpu.core_type<tc>, window_params = [{transform_indices = @transform_0, window_bounds = array<i64: 2, 256>}, {transform_indices = @transform_1, window_bounds = array<i64: 1, 256>}, {transform_indices = @transform_2, window_bounds = array<i64: 2, 256>}]} {
    %c0 = arith.constant 0 : index
    %c0_0 = arith.constant 0 : index
    %0 = vector.load %arg3[%c0, %c0_0] : memref<1x256xf32, #tpu.memory_space<vmem>>, vector<1x256xf32>
    %c0_1 = arith.constant 0 : index
    %c0_2 = arith.constant 0 : index
    %1 = vector.load %arg2[%c0_1, %c0_2] : memref<2x256xf32, #tpu.memory_space<vmem>>, vector<2x256xf32>
    %2 = vector.broadcast %0 : vector<1x256xf32> to vector<2x256xf32>
    %3 = arith.addf %1, %2 : vector<2x256xf32>
    %c0_3 = arith.constant 0 : index
    %c0_4 = arith.constant 0 : index
    %4 = vector.load %arg4[%c0_3, %c0_4] : memref<2x256xf32, #tpu.memory_space<vmem>>, vector<2x256xf32>
    tpu.vector_store %arg4[%c0_3, %c0_4], %3 {strides = array<i32>} : memref<2x256xf32, #tpu.memory_space<vmem>>, vector<2x256xf32>,
    return
  }
  func.func @transform_0(%arg0: i32, %arg1: i32) -> (i32, i32) {
    %c0_i32 = arith.constant 0 : i32
    return %arg0, %arg1 : i32, i32
  }
  func.func @transform_1(%arg0: i32, %arg1: i32) -> (i32, i32) {
    %c0_i32 = arith.constant 0 : i32
    %c0_i32_0 = arith.constant 0 : i32
    return %c0_i32, %arg1 : i32, i32
  }
  func.func @transform_2(%arg0: i32, %arg1: i32) -> (i32, i32) {
    %c0_i32 = arith.constant 0 : i32
    return %arg0, %arg1 : i32, i32
  }
}

</mosaic_0001>

<llo_original>
// kernel: tpu_custom_call.1
$region0: #{tpu_custom_call.1}
  #allocation0 [shape = 'u32[]', space=smem, size = 0x4, offset = 0x4, fixed_abs, tag = 'smem constant byte address 0x4 - core index']
  #allocation1 [shape = 'u32[144,128]{1,0:T(1,128)}', space=vmem, size = 0x12000, scoped, tag = 'internal scratch']
  %s0 = inlined_call_operand.hbm [shape: f32[2,256], index: 0, kind: input, shape index: {}]
  %s1 = inlined_call_operand.vmem [shape: f32[1,256], index: 1, kind: input, shape index: {}]
  %s2 = inlined_call_operand.hbm [shape: f32[2,256], index: 2, kind: output, shape index: {}]
  %s3 = sld [smem:[#allocation0]]
  $region22: #{tpu_custom_call.1} parent=0
    _
  %s5 = ssub.s32 1, %s3
  %s6 = scalar_select 0, %s5, %s3
  $region1: #{tpu_custom_call.1} parent=0
    #allocation2 [shape = 'u8[2048]{0}', space=vmem, size = 0x800, scoped, tag = 'input window, operand 0, single buffered']
    #allocation3 [shape = 's32[1]{0}', space=sflag, size = 0x4, scoped, tag = 'scoped memory for tpu_custom_call.1']
    #allocation4 [shape = 's32[1]{0}', space=sflag, size = 0x4, scoped, tag = 'scoped memory for tpu_custom_call.1']
    #allocation5 [shape = 'u8[2048]{0}', space=vmem, size = 0x800, scoped, tag = 'output window, operand 0, single buffered']
    %7 = vsyncpa [#allocation3], 0
    %8 = vsyncpa [#allocation4], 0
    // Predicated region
    $region2: #{tpu_custom_call.1} parent=1 // pred_check
      _
    $region3: #{tpu_custom_call.1} parent=1 // pred_check_branch
      %10 = sbr.rel (0) target = $region5
    $region4: #{tpu_custom_call.1} parent=1 // pred_region
      %s12 = ssub.s32 64, 64
      %13 = vsyncadd [#allocation3], %s12
      %s15 = sshll.u32 [#allocation2], 4
      %s16 = int_to_ptr.vmem [resolvable:$true] %s15
      %18 = dma.hbm_to_vmem [thread:$0]  %s0, 64, %s16, [#allocation3]
    $region5: #{tpu_custom_call.1} parent=1 // pred_fallthru
      _
    // Predicated region
    $region6: #{tpu_custom_call.1} parent=1 // pred_check
      _
    $region7: #{tpu_custom_call.1} parent=1 // pred_check_branch
      %20 = sbr.rel (0) target = $region9
    $region8: #{tpu_custom_call.1} parent=1 // pred_region
      _
    $region9: #{tpu_custom_call.1} parent=1 // pred_fallthru
      _
    // Predicated region
    $region10: #{tpu_custom_call.1} parent=1 // pred_check
      _
    $region11: #{tpu_custom_call.1} parent=1 // pred_check_branch
      %22 = sbr.rel (0) target = $region13
    $region12: #{tpu_custom_call.1} parent=1 // pred_region
      %23 = dma.done [#allocation3], 64
    $region13: #{tpu_custom_call.1} parent=1 // pred_fallthru
      _
    %v24 = vld [vmem:[%s1] sm:$0x3]
    %v25 = vld [vmem:[#allocation2] sm:$0xf]
    %v27 = vlaneseq
    %v28 = vshrl.u32 %v27, 7
    %v29 = vsub.s32 0, %v28
    %v30 = vrot.slane %v24, %v29
    %v31 = vlaneseq
    %v32 = vshrl.u32 %v31, 7
    %v33 = vsub.s32 1, %v32
    %v34 = vrot.slane %v24, %v33
    %v35 = vcombine.low %v30, %v34
    %v37 = vunpack.c.l.s4 1983009808
    %v38 = vunpack.c.0.s8 %v37
    %v39 = vlaneseq
    %v40 = vshrl.u32 %v39, 7
    %v41 = vsub.s32 %v38, %v40
    %v42 = vrot.slane %v35, %v41
    %v44 = vadd.f32 %v25, %v42
    %45 = vst [vmem:[#allocation5] sm:$0xf] %v44
    // Predicated region
    $region14: #{tpu_custom_call.1} parent=1 // pred_check
      _
    $region15: #{tpu_custom_call.1} parent=1 // pred_check_branch
      %47 = sbr.rel (0) target = $region17
    $region16: #{tpu_custom_call.1} parent=1 // pred_region
      %s49 = ssub.s32 64, 64
      %50 = vsyncadd [#allocation4], %s49
      %s52 = sshll.u32 [#allocation5], 4
      %s53 = int_to_ptr.vmem [resolvable:$true] %s52
      %55 = dma.vmem_to_hbm [thread:$0]  %s53, 64, %s2, [#allocation4]
    $region17: #{tpu_custom_call.1} parent=1 // pred_fallthru
      _
    // Predicated region
    $region18: #{tpu_custom_call.1} parent=1 // pred_check
      _
    $region19: #{tpu_custom_call.1} parent=1 // pred_check_branch
      %57 = sbr.rel (0) target = $region21
    $region20: #{tpu_custom_call.1} parent=1 // pred_region
      %58 = dma.done [#allocation4], 64
    $region21: #{tpu_custom_call.1} parent=1 // pred_fallthru
      _
    %59 = vsyncpa [#allocation3], 1
    %60 = vsyncpa [#allocation4], 1

</llo_original>
